<compile_context>
chip_gen: v5e
topology: v5e:2x2
jax: 0.10.0
libtpu: 0.0.40
codegen_flags: <defaults>
</compile_context>

<pallas_src>
import jax
import jax.numpy as jnp
from jax.experimental import pallas as pl
from jax.experimental.pallas import tpu as pltpu


def _value_head_kernel(x_ref, w_ref, b_ref, o_ref):
    # Cast to f32 for the accumulation (at least as precise as the PyTorch
    # matmul done in the weight dtype after the .to(weight.dtype) cast).
    x = x_ref[...].astype(jnp.float32)            # (tile_m, H)
    w = w_ref[...].astype(jnp.float32)            # (1, H) -> broadcast over rows
    # Degenerate N=1 matvec: VPU multiply + lane reduce instead of MXU.
    acc = jnp.sum(x * w, axis=-1, keepdims=True)  # (tile_m, 1) f32
    acc = acc + b_ref[0]                          # scalar bias from SMEM
    o_ref[...] = acc.astype(o_ref.dtype)


def _round_up(x, m):
    return ((x + m - 1) // m) * m


def _select_tile_m(M, H, x_itemsize, *, max_tile_m=1024, vmem_budget_bytes=40 << 20):
    """Pick the largest row tile that keeps the pipeline double-buffered in VMEM.

    Budget accounts for: 2x double-buffered input tile + one f32 compute
    intermediate of the same footprint.  max_tile_m=1024 keeps the tile safe
    on v7x's smaller (64 MiB physical) VMEM while hitting the ~85% HBM
    roofline plateau measured at 512-1024 row tiles on v5e/v6e.
    """
    per_row = H * (2 * x_itemsize + 4)
    rows = max(8, vmem_budget_bytes // per_row)
    tile_m = int(min(max_tile_m, rows))
    # Sublane granularity: multiple of 16 covers bf16 packing (8 is f32 min).
    tile_m = (tile_m // 16) * 16 if tile_m >= 16 else 8
    # Never tile past the (sublane-rounded) problem size.
    tile_m = min(tile_m, _round_up(M, 16))
    return max(tile_m, 8)


def value_head_forward(hidden_states, weight, bias, *, tile_m=None):
    """hidden_states: [B, S, H]; weight: [1, H] (PyTorch Linear layout);
    bias: [1].  Returns [B, S, 1] in the weight dtype."""
    B, S, H = hidden_states.shape
    assert weight.shape == (1, H), "weight must be (1, hidden) like nn.Linear(hidden, 1)"
    M = B * S
    out_dtype = weight.dtype

    x2d = hidden_states.reshape(M, H)
    x_itemsize = x2d.dtype.itemsize

    if tile_m is None:
        tile_m = _select_tile_m(M, H, x_itemsize)

    # Pad rows so large tiles work for arbitrary B*S; padded rows are sliced
    # off after the call (their garbage output is never read).
    m_pad = pl.cdiv(M, tile_m) * tile_m
    if m_pad != M:
        x2d = jnp.pad(x2d, ((0, m_pad - M), (0, 0)))
    grid = (m_pad // tile_m,)

    # Bias as a single f32 scalar in SMEM (avoids a padded (8,128) VMEM tile).
    bias_smem = bias.reshape(1).astype(jnp.float32)

    # Explicit VMEM limit: double-buffered X + f32 intermediate + weight +
    # double-buffered output + headroom (exceeds the 16/32 MiB scoped default
    # for big tiles; stays well under v7x's 64 MiB physical VMEM).
    vmem_need = (
        2 * tile_m * H * x_itemsize          # double-buffered input tile
        + tile_m * H * 4                     # f32 compute intermediate
        + 2 * H * weight.dtype.itemsize      # resident weight (+ buffer)
        + 2 * tile_m * jnp.dtype(out_dtype).itemsize
    )
    vmem_limit = int(min(56 << 20, max(16 << 20, vmem_need + (4 << 20))))

    cost = pl.CostEstimate(
        flops=2 * M * H,
        transcendentals=0,
        bytes_accessed=(M * H * x_itemsize
                        + H * weight.dtype.itemsize
                        + M * jnp.dtype(out_dtype).itemsize),
    )

    out2d = pl.pallas_call(
        _value_head_kernel,
        out_shape=jax.ShapeDtypeStruct((m_pad, 1), out_dtype),
        grid_spec=pltpu.PrefetchScalarGridSpec(
            num_scalar_prefetch=0,
            grid=grid,
            in_specs=[
                pl.BlockSpec((tile_m, H), lambda i: (i, 0)),        # activations tile
                pl.BlockSpec((1, H), lambda i: (0, 0)),             # full weight, resident
                pl.BlockSpec(memory_space=pltpu.MemorySpace.SMEM),  # scalar bias
            ],
            out_specs=pl.BlockSpec((tile_m, 1), lambda i: (i, 0)),
        ),
        compiler_params=pltpu.CompilerParams(
            # Single row axis is fully parallel -> shards across v7x's 2 TCs
            # when the grid has >= 2 steps.
            dimension_semantics=("parallel",),
            vmem_limit_bytes=vmem_limit,
        ),
        cost_estimate=cost,
    )(x2d, weight, bias_smem)

    # NOTE: output last dim is 1 (masked 1-lane stores); with large tile_m the
    # store cost is negligible (M*4 bytes total), so the lane-dense output
    # restructuring is intentionally not applied.
    return out2d[:M].reshape(B, S, 1)


if __name__ == "__main__":
    # Small shapes consistent with the module: batch=2, seq=8, hidden=32.
    B, S, H = 2, 8, 32

    key = jax.random.PRNGKey(0)
    k_x, k_w, k_b = jax.random.split(key, 3)

    # Deterministic synthetic parameters (nn.Linear(hidden, 1) layout: (1, H) weight).
    hidden_states = jax.random.normal(k_x, (B, S, H), dtype=jnp.float32)
    bound = 1.0 / (H ** 0.5)
    weight = jax.random.uniform(k_w, (1, H), minval=-bound, maxval=bound,
                                dtype=jnp.float32)
    bias = jax.random.uniform(k_b, (1,), minval=-bound, maxval=bound,
                              dtype=jnp.float32)

    out = value_head_forward(hidden_states, weight, bias)
    out = jax.block_until_ready(out)

    # Reference check against plain JAX.
    ref = (hidden_states.reshape(B * S, H) @ weight.T + bias).reshape(B, S, 1)
    assert out.shape == (B, S, 1)
    assert jnp.allclose(out, ref, atol=1e-5, rtol=1e-5)

    print("KERNEL_OK")
</pallas_src>

<mosaic_0001>
module attributes {stable_mosaic.version = 11 : i64} {
  func.func @_value_head_kernel(%arg0: i32, %arg1: memref<16x32xf32, #tpu.memory_space<vmem>>, %arg2: memref<1x32xf32, #tpu.memory_space<vmem>>, %arg3: memref<1xf32, #tpu.memory_space<smem>>, %arg4: memref<16x1xf32, #tpu.memory_space<vmem>>) attributes {dimension_semantics = [#tpu.dimension_semantics<parallel>], iteration_bounds = array<i64: 1>, scalar_prefetch = 0 : i64, scratch_operands = 0 : i64, tpu.core_type = #tpu.core_type<tc>, window_params = [{transform_indices = @transform_0, window_bounds = array<i64: 16, 32>}, {pipeline_mode = #tpu.pipeline_mode<synchronous>, transform_indices = @transform_1, window_bounds = array<i64: 1, 32>}, {transform_indices = @transform_2, window_bounds = array<i64: 1>}, {transform_indices = @transform_3, window_bounds = array<i64: 16, 1>}]} {
    %c0 = arith.constant 0 : index
    %c0_0 = arith.constant 0 : index
    %0 = vector.load %arg1[%c0, %c0_0] : memref<16x32xf32, #tpu.memory_space<vmem>>, vector<16x32xf32>
    %c0_1 = arith.constant 0 : index
    %c0_2 = arith.constant 0 : index
    %1 = vector.load %arg2[%c0_1, %c0_2] : memref<1x32xf32, #tpu.memory_space<vmem>>, vector<1x32xf32>
    %2 = vector.broadcast %1 : vector<1x32xf32> to vector<16x32xf32>
    %3 = arith.mulf %0, %2 : vector<16x32xf32>
    %cst = arith.constant dense<0.000000e+00> : vector<16xf32>
    %4 = vector.multi_reduction <add>, %3, %cst [1] : vector<16x32xf32> to vector<16xf32>
    %5 = vector.shape_cast %4 : vector<16xf32> to vector<16x1xf32>
    %c0_3 = arith.constant 0 : index
    %6 = memref.load %arg3[%c0_3] : memref<1xf32, #tpu.memory_space<smem>>
    %7 = vector.broadcast %6 : f32 to vector<16x1xf32>
    %8 = arith.addf %5, %7 : vector<16x1xf32>
    %c0_4 = arith.constant 0 : index
    %c0_5 = arith.constant 0 : index
    %9 = vector.load %arg4[%c0_4, %c0_5] : memref<16x1xf32, #tpu.memory_space<vmem>>, vector<16x1xf32>
    tpu.vector_store %arg4[%c0_4, %c0_5], %8 {strides = array<i32>} : memref<16x1xf32, #tpu.memory_space<vmem>>, vector<16x1xf32>,
    return
  }
  func.func @transform_0(%arg0: i32) -> (i32, i32) {
    %c0_i32 = arith.constant 0 : i32
    %c0_i32_0 = arith.constant 0 : i32
    return %arg0, %c0_i32 : i32, i32
  }
  func.func @transform_1(%arg0: i32) -> (i32, i32) {
    %c0_i32 = arith.constant 0 : i32
    %c0_i32_0 = arith.constant 0 : i32
    %c0_i32_1 = arith.constant 0 : i32
    return %c0_i32, %c0_i32_0 : i32, i32
  }
  func.func @transform_2(%arg0: i32) -> i32 {
    %c0_i32 = arith.constant 0 : i32
    %c0_i32_0 = arith.constant 0 : i32
    return %c0_i32 : i32
  }
  func.func @transform_3(%arg0: i32) -> (i32, i32) {
    %c0_i32 = arith.constant 0 : i32
    %c0_i32_0 = arith.constant 0 : i32
    return %arg0, %c0_i32 : i32, i32
  }
}

</mosaic_0001>

<llo_original>
// kernel: tpu_custom_call.1
$region0: #{tpu_custom_call.1}
  #allocation0 [shape = 'u32[]', space=smem, size = 0x4, offset = 0x4, fixed_abs, tag = 'smem constant byte address 0x4 - core index']
  #allocation1 [shape = 'u32[72,128]{1,0:T(1,128)}', space=vmem, size = 0x9000, scoped, tag = 'internal scratch']
  #allocation2 [shape = 'f32[1]{0:T(128)S(6)}', space=smem, size = 0x200, scoped, tag = 'scoped memory for tpu_custom_call.1']
  %s0 = inlined_call_operand.hbm [shape: f32[16,32], index: 0, kind: input, shape index: {}]
  %s1 = inlined_call_operand.vmem [shape: f32[1,32], index: 1, kind: input, shape index: {}]
  %s2 = inlined_call_operand.<no memory space> [shape: f32[1], index: 2, kind: input, shape index: {}]
  %s3 = inlined_call_operand.vmem [shape: f32[16,1], index: 3, kind: output, shape index: {}]
  %s4 = sld [smem:[#allocation0]]
  $region26: #{tpu_custom_call.1} parent=0
    _
  %s6 = ssub.s32 1, %s4
  %s7 = scalar_select 0, %s6, %s4
  %8 = sst [smem:[#allocation2]] %s2
  $region1: #{tpu_custom_call.1} parent=0
    #allocation3 [shape = 'u8[8192]{0}', space=vmem, size = 0x2000, scoped, tag = 'input window, operand 0, single buffered']
    #allocation4 [shape = 's32[1]{0}', space=sflag, size = 0x4, scoped, tag = 'scoped memory for tpu_custom_call.1']
    %9 = vsyncpa [#allocation4], 0
    // Predicated region
    $region2: #{tpu_custom_call.1} parent=1 // pred_check
      _
    $region3: #{tpu_custom_call.1} parent=1 // pred_check_branch
      %11 = sbr.rel (0) target = $region5
    $region4: #{tpu_custom_call.1} parent=1 // pred_region
      %13 = vsyncadd [#allocation4], 0
      %s14 = sshll.u32 %s0, 4
      %s15 = int_to_ptr.hbm [resolvable:$true] %s14
      %s16 = sshll.u32 [#allocation3], 4
      %s17 = int_to_ptr.vmem [resolvable:$true] %s16
      %22 = dma.hbm_to_vmem [thread:$0]  %s15, 256, %s17, [#allocation4], 128, 128, 8
    $region5: #{tpu_custom_call.1} parent=1 // pred_fallthru
      _
    // Predicated region
    $region6: #{tpu_custom_call.1} parent=1 // pred_check
      _
    $region7: #{tpu_custom_call.1} parent=1 // pred_check_branch
      %24 = sbr.rel (0) target = $region9
    $region8: #{tpu_custom_call.1} parent=1 // pred_region
      _
    $region9: #{tpu_custom_call.1} parent=1 // pred_fallthru
      _
    // Predicated region
    $region10: #{tpu_custom_call.1} parent=1 // pred_check
      _
    $region11: #{tpu_custom_call.1} parent=1 // pred_check_branch
      %26 = sbr.rel (0) target = $region13
    $region12: #{tpu_custom_call.1} parent=1 // pred_region
      _
    $region13: #{tpu_custom_call.1} parent=1 // pred_fallthru
      _
    // Predicated region
    $region14: #{tpu_custom_call.1} parent=1 // pred_check
      _
    $region15: #{tpu_custom_call.1} parent=1 // pred_check_branch
      %28 = sbr.rel (0) target = $region17
    $region16: #{tpu_custom_call.1} parent=1 // pred_region
      %30 = dma.done [#allocation4], 256
    $region17: #{tpu_custom_call.1} parent=1 // pred_fallthru
      _
    %v31 = vld [vmem:[#allocation3] sm:$0xff]
    %v32 = vld [vmem:[#allocation3 + $0x8] sm:$0xff]
    %v33 = vld [vmem:[%s1] sm:$0x1]
    %v35 = vperm.slane %v33, 0
    %v37 = vmul.f32 %v31, %v35
    %v38 = vmul.f32 %v32, %v35
    %vm39 = vcmask 261120
    %v40 = vsel %vm39, %v37, 0.0
    %41 = vadd.xlane.f32.xlu0 %v40
    %v42 = vpop.xlane.xlu0 %41
    %v43 = vsel %vm39, %v38, 0.0
    %44 = vadd.xlane.f32.xlu0 %v43
    %v45 = vpop.xlane.xlu0 %44
    %s46 = sld [smem:[#allocation2]]
    %v47 = vstv %s46
    %v48 = vadd.f32 %v42, %v47
    %v49 = vadd.f32 %v45, %v47
    %vm50 = vcmask 7168
    %51 = vst.msk [vmem:[%s3] sm:$0xff] %vm50, %v48
    %52 = vst.msk [vmem:[%s3 + $0x8] sm:$0xff] %vm50, %v49
    // Predicated region
    $region18: #{tpu_custom_call.1} parent=1 // pred_check
      _
    $region19: #{tpu_custom_call.1} parent=1 // pred_check_branch
      %54 = sbr.rel (0) target = $region21
    $region20: #{tpu_custom_call.1} parent=1 // pred_region
      _
    $region21: #{tpu_custom_call.1} parent=1 // pred_fallthru
      _
    // Predicated region
    $region22: #{tpu_custom_call.1} parent=1 // pred_check
      _
    $region23: #{tpu_custom_call.1} parent=1 // pred_check_branch
      %56 = sbr.rel (0) target = $region25
    $region24: #{tpu_custom_call.1} parent=1 // pred_region
      _
    $region25: #{tpu_custom_call.1} parent=1 // pred_fallthru
      _
    %57 = vsyncpa [#allocation4], 1

</llo_original>
